<compile_context>
chip_gen: v7x
topology: tpu7x:2x2x1
jax: 0.10.0
libtpu: 0.0.40
codegen_flags: <defaults>
</compile_context>

<pallas_src>
import functools

import jax
import jax.numpy as jnp
from jax import lax
from jax.experimental import pallas as pl
from jax.experimental.pallas import tpu as pltpu

_PAIRWISE_EPS = 1e-6   # torch.nn.functional.pairwise_distance default eps


def _vmem_limits():
    """Generation-aware (scoped-VMEM limit, working-set budget) in bytes."""
    try:
        cap = int(pltpu.get_tpu_info().vmem_capacity_bytes)
    except Exception:
        cap = 64 * 1024 * 1024          # conservative fallback (v7x per-TC VMEM)
    if cap <= 0:
        cap = 64 * 1024 * 1024
    # Leave headroom for compiler-internal scratch; cap at 96 MiB even on
    # 128 MiB parts so double-buffered pipelining always fits.
    limit = min(max(cap - 16 * 1024 * 1024, 32 * 1024 * 1024), 96 * 1024 * 1024)
    budget = limit - 8 * 1024 * 1024
    return limit, budget


# --------------------------------------------------------------------------
# Contrastive (supervised NT-Xent-style) loss
# --------------------------------------------------------------------------
def _contrastive_kernel(e_rows_ref, e_t_ref, lab_row_ref, lab_col_ref, out_ref, *,
                        inv_temperature, num_nodes, row_tile):
    i = pl.program_id(0)

    @pl.when(i == 0)
    def _init():
        out_ref[...] = jnp.zeros_like(out_ref)

    # (tb, N) similarity block: bf16 operands on the native MXU path,
    # f32 accumulation (no Precision.HIGHEST multi-pass decomposition).
    sim = jnp.dot(e_rows_ref[...], e_t_ref[...],
                  preferred_element_type=jnp.float32) * inv_temperature

    # Numerically-stable row-wise logsumexp (dim=1 in the PyTorch reference).
    m = jnp.max(sim, axis=-1, keepdims=True)
    lse = m + jnp.log(jnp.sum(jnp.exp(sim - m), axis=-1, keepdims=True))

    # sum_j sign_j * log_prob_j  (sign = +1 same label, -1 otherwise), rewritten
    # as 2*S_pos - S_all + (N - 2*c)*lse to avoid materializing the (tb, N)
    # `sign` and `log_prob` temporaries (extra reductions ride the XLU slot).
    eq = lab_row_ref[...] == lab_col_ref[...]                        # (tb, N) bool
    s_pos = jnp.sum(jnp.where(eq, sim, 0.0), axis=-1, keepdims=True)
    c_pos = jnp.sum(eq.astype(jnp.float32), axis=-1, keepdims=True)
    s_all = jnp.sum(sim, axis=-1, keepdims=True)
    row_sum = 2.0 * s_pos - s_all + (float(num_nodes) - 2.0 * c_pos) * lse

    # Mask rows past num_nodes (last, possibly partial, tile) and fold the tile
    # into the resident scalar accumulator (no masked per-row writeback).
    row_ids = i * row_tile + lax.broadcasted_iota(jnp.int32, (row_tile, 1), 0)
    tile_sum = jnp.sum(jnp.where(row_ids < num_nodes, row_sum, 0.0),
                       axis=0, keepdims=True)                        # (1, 1)
    out_ref[...] += tile_sum


def _choose_row_tile(n, d, budget):
    if n <= 8:
        return n
    # Resident across the whole grid: bf16 (D, N) RHS + (1, N) labels.  Counted
    # double-buffered (constant block index is fetched once, but two buffers
    # are still allocated by the pipeliner).
    # TODO(synk): single-buffer the constant-index inputs (pipeline_mode=
    # pl.Buffered(1)) to halve this once that path is exercised in CI.
    resident = 2 * (n * d * 2) + 2 * (n * 4)
    # Per tiled row: bf16 input row (double-buffered) + ~6 live N-wide f32
    # temporaries (sim, exp, masked-sim, eq, reduction scratch) + slack.
    per_row = 2 * (d * 2) + 6 * (n * 4) + 2048
    avail = max(budget - resident, 8 * per_row)
    tb = int(min(n, avail // per_row, 512))   # cap keeps vreg/VMEM pressure low
    return max(8, (tb // 8) * 8)


def contrastive_loss(embeddings, labels, *, temperature=0.07):
    """loss = -mean((pos_mask - neg_mask) * log_softmax(E @ E.T / T, dim=1))."""
    n, d = embeddings.shape
    # bf16 operands: halves DMA bytes and the resident RHS footprint; the MXU
    # accumulates in f32 (validated against the f32 reference below).
    e_bf = embeddings.astype(jnp.bfloat16)
    e_t = e_bf.T                                   # (D, N), transposed once
    labels_i = labels.reshape(-1).astype(jnp.int32)
    lab_row = labels_i.reshape(n, 1)
    lab_col = labels_i.reshape(1, n)

    vmem_limit, vmem_budget = _vmem_limits()
    tb = _choose_row_tile(n, d, vmem_budget)
    grid = (pl.cdiv(n, tb),)

    kernel = functools.partial(
        _contrastive_kernel,
        inv_temperature=float(1.0 / temperature),
        num_nodes=n,
        row_tile=tb,
    )

    # TODO(synk): for very large N the resident (D, N) RHS should be tiled with
    # an online (flash-style) logsumexp; not needed at graph-node scales.
    total = pl.pallas_call(
        kernel,
        out_shape=jax.ShapeDtypeStruct((1, 1), jnp.float32),
        grid=grid,
        in_specs=[
            pl.BlockSpec((tb, d), lambda i: (i, 0)),   # row tile (pipelined)
            pl.BlockSpec((d, n), lambda i: (0, 0)),    # resident bf16 E.T (K-major RHS)
            pl.BlockSpec((tb, 1), lambda i: (i, 0)),   # row labels
            pl.BlockSpec((1, n), lambda i: (0, 0)),    # all labels (lane-dense)
        ],
        out_specs=pl.BlockSpec((1, 1), lambda i: (0, 0)),   # scalar accumulator
        compiler_params=pltpu.CompilerParams(
            dimension_semantics=("arbitrary",),        # output carried across grid
            vmem_limit_bytes=vmem_limit,
        ),
    )(e_bf, e_t, lab_row, lab_col)

    return -total[0, 0] / (n * n)


# --------------------------------------------------------------------------
# Triplet loss (in-kernel gather via scalar-prefetched indices)
# --------------------------------------------------------------------------
def _triplet_kernel(a_idx_ref, p_idx_ref, n_idx_ref, e_ref, out_ref, *,
                    margin, num_triplets):
    def body(j, acc):
        a = e_ref[pl.ds(a_idx_ref[j], 1), :].astype(jnp.float32)
        p = e_ref[pl.ds(p_idx_ref[j], 1), :].astype(jnp.float32)
        ng = e_ref[pl.ds(n_idx_ref[j], 1), :].astype(jnp.float32)
        dp = a - p + _PAIRWISE_EPS
        dn = a - ng + _PAIRWISE_EPS
        pos_dist = jnp.sqrt(jnp.sum(dp * dp))
        neg_dist = jnp.sqrt(jnp.sum(dn * dn))
        return acc + jnp.maximum(pos_dist - neg_dist + margin, 0.0)

    # TODO(synk): for very large T, vectorize per-tile with an in-kernel
    # jnp.take gather instead of the per-row loop.
    total = lax.fori_loop(0, num_triplets, body, jnp.float32(0.0))
    out_ref[...] = jnp.reshape(total, (1, 1))


def triplet_loss(embeddings, triplets, *, margin=1.0):
    """mean(relu(||a - p + eps|| - ||a - n + eps|| + margin))."""
    anchor_idx, pos_idx, neg_idx = triplets
    a_idx = anchor_idx.reshape(-1).astype(jnp.int32)
    p_idx = pos_idx.reshape(-1).astype(jnp.int32)
    n_idx = neg_idx.reshape(-1).astype(jnp.int32)
    t = int(a_idx.shape[0])
    n, d = embeddings.shape
    vmem_limit, _ = _vmem_limits()

    kernel = functools.partial(_triplet_kernel, margin=float(margin),
                               num_triplets=t)

    total = pl.pallas_call(
        kernel,
        out_shape=jax.ShapeDtypeStruct((1, 1), jnp.float32),
        grid_spec=pltpu.PrefetchScalarGridSpec(
            num_scalar_prefetch=3,                       # anchor / pos / neg indices
            grid=(1,),
            in_specs=[pl.BlockSpec((n, d), lambda i, a, p, ng: (0, 0))],  # resident E
            out_specs=pl.BlockSpec((1, 1), lambda i, a, p, ng: (0, 0)),
        ),
        compiler_params=pltpu.CompilerParams(
            dimension_semantics=("arbitrary",),
            vmem_limit_bytes=vmem_limit,
        ),
    )(a_idx, p_idx, n_idx, embeddings)

    return total[0, 0] / t


# --------------------------------------------------------------------------
# NetworkLoss forward
# --------------------------------------------------------------------------
class NetworkLoss:
    """Pallas-backed equivalent of the PyTorch NetworkLoss module (forward only)."""

    def __init__(self, contrastive_weight=1.0, triplet_weight=0.1,
                 margin=1.0, temperature=0.07):
        self.contrastive_weight = contrastive_weight
        self.triplet_weight = triplet_weight
        self.margin = margin
        self.temperature = temperature

    def __call__(self, embeddings, labels, triplets=None, adj_matrix=None):
        del adj_matrix  # unused, matching the reference module
        losses = {}
        c = contrastive_loss(embeddings, labels, temperature=self.temperature)
        losses["contrastive"] = c
        total = self.contrastive_weight * c
        if triplets is not None:
            t = triplet_loss(embeddings, triplets, margin=self.margin)
            losses["triplet"] = t
            total = total + self.triplet_weight * t
        losses["total"] = total
        return losses


# --------------------------------------------------------------------------
# Pure-JAX references & self-test
# --------------------------------------------------------------------------
def _ref_contrastive(e, labels, temperature):
    e32 = e.astype(jnp.float32)
    sim = jnp.matmul(e32, e32.T, precision=lax.Precision.HIGHEST) / temperature
    lm = labels[None, :] == labels[:, None]
    pos = lm.astype(jnp.float32)
    neg = (~lm).astype(jnp.float32)
    lp = jax.nn.log_softmax(sim, axis=1)
    return -jnp.mean(pos * lp - neg * lp)


def _ref_triplet(e, triplets, margin):
    a_idx, p_idx, n_idx = triplets
    a = e[a_idx].astype(jnp.float32)
    p = e[p_idx].astype(jnp.float32)
    n = e[n_idx].astype(jnp.float32)
    dp = jnp.sqrt(jnp.sum((a - p + _PAIRWISE_EPS) ** 2, axis=-1))
    dn = jnp.sqrt(jnp.sum((a - n + _PAIRWISE_EPS) ** 2, axis=-1))
    return jnp.mean(jnp.maximum(dp - dn + margin, 0.0))


if __name__ == "__main__":
    key = jax.random.PRNGKey(0)
    k1, k2, k3, k4, k5 = jax.random.split(key, 5)

    num_nodes, dim = 64, 32
    num_triplets = 16
    embeddings = jax.random.normal(k1, (num_nodes, dim), dtype=jnp.float32) * 0.25
    labels = jax.random.randint(k2, (num_nodes,), 0, 4, dtype=jnp.int32)
    triplets = (
        jax.random.randint(k3, (num_triplets,), 0, num_nodes, dtype=jnp.int32),
        jax.random.randint(k4, (num_triplets,), 0, num_nodes, dtype=jnp.int32),
        jax.random.randint(k5, (num_triplets,), 0, num_nodes, dtype=jnp.int32),
    )

    loss_fn = NetworkLoss(contrastive_weight=1.0, triplet_weight=0.1,
                          margin=1.0, temperature=0.07)
    losses = loss_fn(embeddings, labels, triplets=triplets)
    losses = jax.block_until_ready(losses)

    ref_c = _ref_contrastive(embeddings, labels, loss_fn.temperature)
    ref_t = _ref_triplet(embeddings, triplets, loss_fn.margin)
    ref_total = loss_fn.contrastive_weight * ref_c + loss_fn.triplet_weight * ref_t

    # bf16 MXU operands with f32 accumulation: relative error on the loss is
    # ~1e-4 at these scales, comfortably inside 2e-3.
    assert jnp.allclose(losses["contrastive"], ref_c, atol=2e-3, rtol=2e-3), (
        losses["contrastive"], ref_c)
    assert jnp.allclose(losses["triplet"], ref_t, atol=1e-5, rtol=1e-4), (
        losses["triplet"], ref_t)
    assert jnp.allclose(losses["total"], ref_total, atol=2e-3, rtol=2e-3), (
        losses["total"], ref_total)

    # Also exercise the no-triplets path once.
    losses_no_trip = jax.block_until_ready(loss_fn(embeddings, labels))
    assert jnp.allclose(losses_no_trip["total"], ref_c, atol=2e-3, rtol=2e-3)

    print("KERNEL_OK")
</pallas_src>

<mosaic_0001>
module attributes {stable_mosaic.version = 11 : i64} {
  func.func @_contrastive_kernel(%arg0: i32, %arg1: memref<64x32xbf16, #tpu.memory_space<vmem>>, %arg2: memref<32x64xbf16, #tpu.memory_space<vmem>>, %arg3: memref<64x1xi32, #tpu.memory_space<vmem>>, %arg4: memref<1x64xi32, #tpu.memory_space<vmem>>, %arg5: memref<1x1xf32, #tpu.memory_space<vmem>>) attributes {dimension_semantics = [#tpu.dimension_semantics<arbitrary>], iteration_bounds = array<i64: 1>, scalar_prefetch = 0 : i64, scratch_operands = 0 : i64, tpu.core_type = #tpu.core_type<tc>, window_params = [{transform_indices = @transform_0, window_bounds = array<i64: 64, 32>}, {pipeline_mode = #tpu.pipeline_mode<synchronous>, transform_indices = @transform_1, window_bounds = array<i64: 32, 64>}, {transform_indices = @transform_2, window_bounds = array<i64: 64, 1>}, {pipeline_mode = #tpu.pipeline_mode<synchronous>, transform_indices = @transform_3, window_bounds = array<i64: 1, 64>}, {pipeline_mode = #tpu.pipeline_mode<synchronous>, transform_indices = @transform_4, window_bounds = array<i64: 1, 1>}]} {
    %c0_i32 = arith.constant 0 : i32
    %0 = arith.cmpi eq, %arg0, %c0_i32 : i32
    %1 = arith.extui %0 : i1 to i32
    %c0_i32_0 = arith.constant 0 : i32
    %2 = arith.cmpi ne, %1, %c0_i32_0 : i32
    scf.if %2 {
      %cst_25 = arith.constant 0.000000e+00 : f32
      %54 = vector.broadcast %cst_25 : f32 to vector<1x1xf32>
      %c0_26 = arith.constant 0 : index
      %c0_27 = arith.constant 0 : index
      %55 = vector.load %arg5[%c0_26, %c0_27] : memref<1x1xf32, #tpu.memory_space<vmem>>, vector<1x1xf32>
      tpu.vector_store %arg5[%c0_26, %c0_27], %54 {strides = array<i32>} : memref<1x1xf32, #tpu.memory_space<vmem>>, vector<1x1xf32>,
    } else {
    }
    %c0 = arith.constant 0 : index
    %c0_1 = arith.constant 0 : index
    %3 = vector.load %arg1[%c0, %c0_1] : memref<64x32xbf16, #tpu.memory_space<vmem>>, vector<64x32xbf16>
    %c0_2 = arith.constant 0 : index
    %c0_3 = arith.constant 0 : index
    %4 = vector.load %arg2[%c0_2, %c0_3] : memref<32x64xbf16, #tpu.memory_space<vmem>>, vector<32x64xbf16>
    %cst = arith.constant dense<0.000000e+00> : vector<64x64xf32>
    %5 = tpu.matmul %3, %4, %cst {dimension_numbers = #tpu.dot_dimension_numbers<[1], [0], [0], [1], [0, 0, 1, 1], [], []>} : vector<64x32xbf16>, vector<32x64xbf16>, vector<64x64xf32> -> vector<64x64xf32>
    %cst_4 = arith.constant 14.2857141 : f32
    %6 = vector.broadcast %cst_4 : f32 to vector<64x64xf32>
    %7 = arith.mulf %5, %6 : vector<64x64xf32>
    %cst_5 = arith.constant dense<0xFF800000> : vector<64xf32>
    %8 = vector.multi_reduction <maximumf>, %7, %cst_5 [1] : vector<64x64xf32> to vector<64xf32>
    %9 = vector.shape_cast %8 : vector<64xf32> to vector<64x1xf32>
    %10 = vector.broadcast %9 : vector<64x1xf32> to vector<64x64xf32>
    %11 = arith.subf %7, %10 : vector<64x64xf32>
    %12 = math.exp %11 : vector<64x64xf32>
    %cst_6 = arith.constant dense<0.000000e+00> : vector<64xf32>
    %13 = vector.multi_reduction <add>, %12, %cst_6 [1] : vector<64x64xf32> to vector<64xf32>
    %14 = vector.shape_cast %13 : vector<64xf32> to vector<64x1xf32>
    %15 = math.log %14 : vector<64x1xf32>
    %16 = arith.addf %9, %15 : vector<64x1xf32>
    %c0_7 = arith.constant 0 : index
    %c0_8 = arith.constant 0 : index
    %17 = vector.load %arg3[%c0_7, %c0_8] : memref<64x1xi32, #tpu.memory_space<vmem>>, vector<64x1xi32>
    %c0_9 = arith.constant 0 : index
    %c0_10 = arith.constant 0 : index
    %18 = vector.load %arg4[%c0_9, %c0_10] : memref<1x64xi32, #tpu.memory_space<vmem>>, vector<1x64xi32>
    %19 = vector.broadcast %17 : vector<64x1xi32> to vector<64x64xi32>
    %20 = vector.broadcast %18 : vector<1x64xi32> to vector<64x64xi32>
    %21 = arith.cmpi eq, %19, %20 : vector<64x64xi32>
    %cst_11 = arith.constant 0.000000e+00 : f32
    %22 = vector.broadcast %cst_11 : f32 to vector<64x64xf32>
    %23 = arith.select %21, %7, %22 : vector<64x64xi1>, vector<64x64xf32>
    %cst_12 = arith.constant dense<0.000000e+00> : vector<64xf32>
    %24 = vector.multi_reduction <add>, %23, %cst_12 [1] : vector<64x64xf32> to vector<64xf32>
    %25 = vector.shape_cast %24 : vector<64xf32> to vector<64x1xf32>
    %26 = arith.extui %21 : vector<64x64xi1> to vector<64x64xi32>
    %27 = arith.sitofp %26 : vector<64x64xi32> to vector<64x64xf32>
    %cst_13 = arith.constant dense<0.000000e+00> : vector<64xf32>
    %28 = vector.multi_reduction <add>, %27, %cst_13 [1] : vector<64x64xf32> to vector<64xf32>
    %29 = vector.shape_cast %28 : vector<64xf32> to vector<64x1xf32>
    %cst_14 = arith.constant dense<0.000000e+00> : vector<64xf32>
    %30 = vector.multi_reduction <add>, %7, %cst_14 [1] : vector<64x64xf32> to vector<64xf32>
    %31 = vector.shape_cast %30 : vector<64xf32> to vector<64x1xf32>
    %cst_15 = arith.constant 2.000000e+00 : f32
    %32 = vector.broadcast %cst_15 : f32 to vector<64x1xf32>
    %33 = arith.mulf %32, %25 : vector<64x1xf32>
    %34 = arith.subf %33, %31 : vector<64x1xf32>
    %cst_16 = arith.constant 2.000000e+00 : f32
    %35 = vector.broadcast %cst_16 : f32 to vector<64x1xf32>
    %36 = arith.mulf %35, %29 : vector<64x1xf32>
    %cst_17 = arith.constant 6.400000e+01 : f32
    %37 = vector.broadcast %cst_17 : f32 to vector<64x1xf32>
    %38 = arith.subf %37, %36 : vector<64x1xf32>
    %39 = arith.mulf %38, %16 : vector<64x1xf32>
    %40 = arith.addf %34, %39 : vector<64x1xf32>
    %c64_i32 = arith.constant 64 : i32
    %41 = arith.muli %arg0, %c64_i32 : i32
    %42 = tpu.iota {dimensions = array<i32: 0>} : vector<64x1xi32>
    %43 = vector.broadcast %41 : i32 to vector<64x1xi32>
    %44 = arith.addi %43, %42 : vector<64x1xi32>
    %c64_i32_18 = arith.constant 64 : i32
    %45 = vector.broadcast %c64_i32_18 : i32 to vector<64x1xi32>
    %46 = arith.cmpi slt, %44, %45 : vector<64x1xi32>
    %cst_19 = arith.constant 0.000000e+00 : f32
    %47 = vector.broadcast %cst_19 : f32 to vector<64x1xf32>
    %48 = arith.select %46, %40, %47 : vector<64x1xi1>, vector<64x1xf32>
    %cst_20 = arith.constant dense<0.000000e+00> : vector<1xf32>
    %49 = vector.multi_reduction <add>, %48, %cst_20 [0] : vector<64x1xf32> to vector<1xf32>
    %50 = vector.shape_cast %49 : vector<1xf32> to vector<1x1xf32>
    %c0_21 = arith.constant 0 : index
    %c0_22 = arith.constant 0 : index
    %51 = vector.load %arg5[%c0_21, %c0_22] : memref<1x1xf32, #tpu.memory_space<vmem>>, vector<1x1xf32>
    %52 = arith.addf %51, %50 : vector<1x1xf32>
    %c0_23 = arith.constant 0 : index
    %c0_24 = arith.constant 0 : index
    %53 = vector.load %arg5[%c0_23, %c0_24] : memref<1x1xf32, #tpu.memory_space<vmem>>, vector<1x1xf32>
    tpu.vector_store %arg5[%c0_23, %c0_24], %52 {strides = array<i32>} : memref<1x1xf32, #tpu.memory_space<vmem>>, vector<1x1xf32>,
    return
  }
  func.func @transform_0(%arg0: i32) -> (i32, i32) {
    %c0_i32 = arith.constant 0 : i32
    %c0_i32_0 = arith.constant 0 : i32
    return %arg0, %c0_i32 : i32, i32
  }
  func.func @transform_1(%arg0: i32) -> (i32, i32) {
    %c0_i32 = arith.constant 0 : i32
    %c0_i32_0 = arith.constant 0 : i32
    %c0_i32_1 = arith.constant 0 : i32
    return %c0_i32, %c0_i32_0 : i32, i32
  }
  func.func @transform_2(%arg0: i32) -> (i32, i32) {
    %c0_i32 = arith.constant 0 : i32
    %c0_i32_0 = arith.constant 0 : i32
    return %arg0, %c0_i32 : i32, i32
  }
  func.func @transform_3(%arg0: i32) -> (i32, i32) {
    %c0_i32 = arith.constant 0 : i32
    %c0_i32_0 = arith.constant 0 : i32
    %c0_i32_1 = arith.constant 0 : i32
    return %c0_i32, %c0_i32_0 : i32, i32
  }
  func.func @transform_4(%arg0: i32) -> (i32, i32) {
    %c0_i32 = arith.constant 0 : i32
    %c0_i32_0 = arith.constant 0 : i32
    %c0_i32_1 = arith.constant 0 : i32
    return %c0_i32, %c0_i32_0 : i32, i32
  }
}

</mosaic_0001>

<llo_original>
// kernel: tpu_custom_call.1
$region0: #{tpu_custom_call.1}
  #allocation0 [shape = 'u32[]', space=smem, size = 0x4, offset = 0x4, fixed_abs, tag = 'smem constant byte address 0x4 - core index']
  #allocation1 [shape = 'u32[144,128]{1,0:T(1,128)}', space=vmem, size = 0x12000, scoped, tag = 'internal scratch']
  %s0 = inlined_call_operand.vmem [shape: bf16[64,32], index: 0, kind: input, shape index: {}]
  %s1 = inlined_call_operand.vmem [shape: bf16[32,64], index: 1, kind: input, shape index: {}]
  %s2 = inlined_call_operand.vmem [shape: s32[64,1], index: 2, kind: input, shape index: {}]
  %s3 = inlined_call_operand.vmem [shape: s32[1,64], index: 3, kind: input, shape index: {}]
  %s4 = inlined_call_operand.hbm [shape: f32[1,1], index: 4, kind: output, shape index: {}]
  %s5 = sld [smem:[#allocation0]]
  $region30: #{tpu_custom_call.1} parent=0
    _
  %s7 = ssub.s32 1, %s5
  %s8 = scalar_select 0, %s7, %s5
  $region1: #{tpu_custom_call.1} parent=0
    #allocation2 [shape = 'u8[512]{0}', space=vmem, size = 0x400, scoped, tag = 'output window, operand 0, single buffered']
    #allocation3 [shape = 's32[1]{0}', space=sflag, size = 0x4, scoped, tag = 'scoped memory for tpu_custom_call.1']
    %9 = vsyncpa [#allocation3], 0
    // Predicated region
    $region2: #{tpu_custom_call.1} parent=1 // pred_check
      _
    $region3: #{tpu_custom_call.1} parent=1 // pred_check_branch
      %11 = sbr.rel (0) target = $region5
    $region4: #{tpu_custom_call.1} parent=1 // pred_region
      _
    $region5: #{tpu_custom_call.1} parent=1 // pred_fallthru
      _
    // Predicated region
    $region6: #{tpu_custom_call.1} parent=1 // pred_check
      _
    $region7: #{tpu_custom_call.1} parent=1 // pred_check_branch
      %13 = sbr.rel (0) target = $region9
    $region8: #{tpu_custom_call.1} parent=1 // pred_region
      _
    $region9: #{tpu_custom_call.1} parent=1 // pred_fallthru
      _
    // Predicated region
    $region10: #{tpu_custom_call.1} parent=1 // pred_check
      _
    $region11: #{tpu_custom_call.1} parent=1 // pred_check_branch
      %15 = sbr.rel (0) target = $region13
    $region12: #{tpu_custom_call.1} parent=1 // pred_region
      _
    $region13: #{tpu_custom_call.1} parent=1 // pred_fallthru
      _
    // Predicated region
    $region14: #{tpu_custom_call.1} parent=1 // pred_check
      _
    $region15: #{tpu_custom_call.1} parent=1 // pred_check_branch
      %17 = sbr.rel (0) target = $region17
    $region16: #{tpu_custom_call.1} parent=1 // pred_region
      _
    $region17: #{tpu_custom_call.1} parent=1 // pred_fallthru
      _
    %p19 = scmp.eq.s32.totalorder 0, 0
    // Predicated region
    $region18: #{tpu_custom_call.1} parent=1 // pred_check
      %p20 = pneg %p19
    $region19: #{tpu_custom_call.1} parent=1 // pred_check_branch
      %22 = sbr.rel (%p20) target = $region21
    $region20: #{tpu_custom_call.1} parent=1 // pred_region
      %vm23 = vcmask 0
      %24 = vst.msk [vmem:[#allocation2] sm:$0x1] %vm23, 0.0
    $region21: #{tpu_custom_call.1} parent=1 // pred_fallthru
      _
    %v25 = vld [vmem:[%s0] sm:$0xf]
    %v26 = vld [vmem:[%s0 + $0x4] sm:$0xf]
    %v27 = vld [vmem:[%s0 + $0x8] sm:$0xf]
    %v28 = vld [vmem:[%s0 + $0xc] sm:$0xf]
    %v29 = vld [vmem:[%s0 + $0x10] sm:$0xf]
    %v30 = vld [vmem:[%s0 + $0x14] sm:$0xf]
    %v31 = vld [vmem:[%s0 + $0x18] sm:$0xf]
    %v32 = vld [vmem:[%s0 + $0x1c] sm:$0xf]
    %v33 = vld [vmem:[%s1] sm:$0xf]
    %v34 = vld [vmem:[%s1 + $0x4] sm:$0xf]
    %v35 = vld [vmem:[%s1 + $0x8] sm:$0xf]
    %v36 = vld [vmem:[%s1 + $0xc] sm:$0xf]
    %v45 = vunpack.c.l.b16 %v25
    %v46 = vunpack.c.l.b16 %v26
    %v47 = vunpack.c.l.b16 %v27
    %v48 = vunpack.c.l.b16 %v28
    %v49 = vunpack.c.l.b16 %v29
    %v50 = vunpack.c.l.b16 %v30
    %v51 = vunpack.c.l.b16 %v31
    %v52 = vunpack.c.l.b16 %v32
    %v53 = vpack.c.b16 %v46, %v45
    %v54 = vpack.c.b16 %v48, %v47
    %v55 = vpack.c.b16 %v50, %v49
    %v56 = vpack.c.b16 %v52, %v51
    %v61 = vunpack.c.l.b16 %v33
    %v62 = vunpack.c.l.b16 %v34
    %v63 = vunpack.c.l.b16 %v35
    %v64 = vunpack.c.l.b16 %v36
    %v65 = vpack.c.b16 %v62, %v61
    %v66 = vpack.c.b16 %v64, %v63
    %vm69 = vcmask 261120
    %v71 = vsel %vm69, %v53, 0
    %v74 = vsel %vm69, %v54, 0
    %v77 = vsel %vm69, %v55, 0
    %v80 = vsel %vm69, %v56, 0
    %82 = vmatprep.subr.bf16.mxu0 0
    %83 = vmatpush1.bf16.msra.mxu0 %v65
    %84 = vmatprep.subr.bf16.mxu0 0
    %85 = vmatpush1.bf16.msra.mxu0 %v66
    %86 = vmatprep.subr.bf16.mxu0 0
    %87 = vmatpush1.bf16.msra.mxu0 0
    %88 = vmatprep.subr.bf16.mxu0 0
    %89 = vmatpush1.bf16.msra.mxu0 0
    %90 = vmatprep.subr.bf16.mxu0 0
    %91 = vmatpush1.bf16.msra.mxu0 0
    %92 = vmatprep.subr.bf16.mxu0 0
    %93 = vmatpush1.bf16.msra.mxu0 0
    %94 = vmatprep.subr.bf16.mxu0 0
    %95 = vmatpush1.bf16.msra.mxu0 0
    %96 = vmatprep.subr.bf16.mxu0 0
    %97 = vmatpush1.bf16.msra.mxu0 0
    %98 = vmatprep.subr.bf16.mxu0 0
    %99 = vmatpush1.bf16.msra.mxu0 0
    %100 = vmatprep.subr.bf16.mxu0 0
    %101 = vmatpush1.bf16.msra.mxu0 0
    %102 = vmatprep.subr.bf16.mxu0 0
    %103 = vmatpush1.bf16.msra.mxu0 0
    %104 = vmatprep.subr.bf16.mxu0 0
    %105 = vmatpush1.bf16.msra.mxu0 0
    %106 = vmatprep.subr.bf16.mxu0 0
    %107 = vmatpush1.bf16.msra.mxu0 0
    %108 = vmatprep.subr.bf16.mxu0 0
    %109 = vmatpush1.bf16.msra.mxu0 0
    %110 = vmatprep.subr.bf16.mxu0 0
    %111 = vmatpush1.bf16.msra.mxu0 0
    %112 = vmatprep.subr.bf16.mxu0 0
    %113 = vmatpush1.bf16.msra.mxu0 0
    %114 = vmatprep.mubr.bf16.mxu0 0
    %115 = vmatmul.mubr.bf16.gmra.mrb[0].mxu0 %v71
    %v116 = vpop.f32.mrb[0].mxu0
    %v117 = vadd.f32 0.0, %v116
    %v118 = vpop.f32.mrb[0].mxu0
    %v119 = vpop.f32.mrb[0].mxu0
    %v120 = vadd.f32 0.0, %v119
    %v121 = vpop.f32.mrb[0].mxu0
    %122 = vmatprep.mubr.bf16.mxu0 0
    %123 = vmatmul.mubr.bf16.gmra.mrb[0].mxu0 %v74
    %v124 = vpop.f32.mrb[0].mxu0
    %v125 = vadd.f32 0.0, %v124
    %v126 = vpop.f32.mrb[0].mxu0
    %v127 = vpop.f32.mrb[0].mxu0
    %v128 = vadd.f32 0.0, %v127
    %v129 = vpop.f32.mrb[0].mxu0
    %130 = vmatprep.mubr.bf16.mxu0 0
    %131 = vmatmul.mubr.bf16.gmra.mrb[0].mxu0 %v77
    %v132 = vpop.f32.mrb[0].mxu0
    %v133 = vadd.f32 0.0, %v132
    %v134 = vpop.f32.mrb[0].mxu0
    %v135 = vpop.f32.mrb[0].mxu0
    %v136 = vadd.f32 0.0, %v135
    %v137 = vpop.f32.mrb[0].mxu0
    %138 = vmatprep.mubr.bf16.mxu0 0
    %139 = vmatmul.mubr.bf16.gmra.mrb[0].mxu0 %v80
    %v140 = vpop.f32.mrb[0].mxu0
    %v141 = vadd.f32 0.0, %v140
    %v142 = vpop.f32.mrb[0].mxu0
    %v143 = vpop.f32.mrb[0].mxu0
    %v144 = vadd.f32 0.0, %v143
    %v145 = vpop.f32.mrb[0].mxu0
    %146 = vdwg.mxu0
    %v147 = vmul.f32 %v117, 14.285714
    %v148 = vmul.f32 %v120, 14.285714
    %v149 = vmul.f32 %v125, 14.285714
    %v150 = vmul.f32 %v128, 14.285714
    %v151 = vmul.f32 %v133, 14.285714
    %v152 = vmul.f32 %v136, 14.285714
    %v153 = vmul.f32 %v141, 14.285714
    %v154 = vmul.f32 %v144, 14.285714
    %vm155 = vcmask 523264
    %v156 = vsel %vm155, %v147, -inf
    %157 = vmax.xlane.f32.xlu0 %v156
    %v158 = vpop.xlane.xlu0 %157
    %v159 = vsel %vm155, %v148, -inf
    %160 = vmax.xlane.f32.xlu0 %v159
    %v161 = vpop.xlane.xlu0 %160
    %v162 = vsel %vm155, %v149, -inf
    %163 = vmax.xlane.f32.xlu0 %v162
    %v164 = vpop.xlane.xlu0 %163
    %v165 = vsel %vm155, %v150, -inf
    %166 = vmax.xlane.f32.xlu0 %v165
    %v167 = vpop.xlane.xlu0 %166
    %v168 = vsel %vm155, %v151, -inf
    %169 = vmax.xlane.f32.xlu0 %v168
    %v170 = vpop.xlane.xlu0 %169
    %v171 = vsel %vm155, %v152, -inf
    %172 = vmax.xlane.f32.xlu0 %v171
    %v173 = vpop.xlane.xlu0 %172
    %v174 = vsel %vm155, %v153, -inf
    %175 = vmax.xlane.f32.xlu0 %v174
    %v176 = vpop.xlane.xlu0 %175
    %v177 = vsel %vm155, %v154, -inf
    %178 = vmax.xlane.f32.xlu0 %v177
    %v179 = vpop.xlane.xlu0 %178
    %v180 = vsub.f32 %v147, %v158
    %v181 = vsub.f32 %v148, %v161
    %v182 = vsub.f32 %v149, %v164
    %v183 = vsub.f32 %v150, %v167
    %v184 = vsub.f32 %v151, %v170
    %v185 = vsub.f32 %v152, %v173
    %v186 = vsub.f32 %v153, %v176
    %v187 = vsub.f32 %v154, %v179
    %v188 = vmul.f32 %v180, 1.442695
    %v189 = vpow.pop %v188
    %v190 = vmul.f32 %v181, 1.442695
    %v191 = vpow.pop %v190
    %v192 = vmul.f32 %v182, 1.442695
    %v193 = vpow.pop %v192
    %v194 = vmul.f32 %v183, 1.442695
    %v195 = vpow.pop %v194
    %v196 = vmul.f32 %v184, 1.442695
    %v197 = vpow.pop %v196
    %v198 = vmul.f32 %v185, 1.442695
    %v199 = vpow.pop %v198
    %v200 = vmul.f32 %v186, 1.442695
    %v201 = vpow.pop %v200
    %v202 = vmul.f32 %v187, 1.442695
    %v203 = vpow.pop %v202
    %v204 = vsel %vm155, %v189, 0.0
    %205 = vadd.xlane.f32.xlu0 %v204
    %v206 = vpop.xlane.xlu0 %205
    %v207 = vsel %vm155, %v191, 0.0
    %208 = vadd.xlane.f32.xlu0 %v207
    %v209 = vpop.xlane.xlu0 %208
    %v210 = vsel %vm155, %v193, 0.0
    %211 = vadd.xlane.f32.xlu0 %v210
    %v212 = vpop.xlane.xlu0 %211
    %v213 = vsel %vm155, %v195, 0.0
    %214 = vadd.xlane.f32.xlu0 %v213
    %v215 = vpop.xlane.xlu0 %214
    %v216 = vsel %vm155, %v197, 0.0
    %217 = vadd.xlane.f32.xlu0 %v216
    %v218 = vpop.xlane.xlu0 %217
    %v219 = vsel %vm155, %v199, 0.0
    %220 = vadd.xlane.f32.xlu0 %v219
    %v221 = vpop.xlane.xlu0 %220
    %v222 = vsel %vm155, %v201, 0.0
    %223 = vadd.xlane.f32.xlu0 %v222
    %v224 = vpop.xlane.xlu0 %223
    %v225 = vsel %vm155, %v203, 0.0
    %226 = vadd.xlane.f32.xlu0 %v225
    %v227 = vpop.xlane.xlu0 %226
    %v228 = vlog2.pop %v206
    %v229 = vmul.f32 %v228, 0.6931472
    %v230 = vlog2.pop %v209
    %v231 = vmul.f32 %v230, 0.6931472
    %v232 = vlog2.pop %v212
    %v233 = vmul.f32 %v232, 0.6931472
    %v234 = vlog2.pop %v215
    %v235 = vmul.f32 %v234, 0.6931472
    %v236 = vlog2.pop %v218
    %v237 = vmul.f32 %v236, 0.6931472
    %v238 = vlog2.pop %v221
    %v239 = vmul.f32 %v238, 0.6931472
    %v240 = vlog2.pop %v224
    %v241 = vmul.f32 %v240, 0.6931472
    %v242 = vlog2.pop %v227
    %v243 = vmul.f32 %v242, 0.6931472
    %v244 = vadd.f32 %v158, %v229
    %v245 = vadd.f32 %v161, %v231
    %v246 = vadd.f32 %v164, %v233
    %v247 = vadd.f32 %v167, %v235
    %v248 = vadd.f32 %v170, %v237
    %v249 = vadd.f32 %v173, %v239
    %v250 = vadd.f32 %v176, %v241
    %v251 = vadd.f32 %v179, %v243
    %v252 = vld [vmem:[%s2] sm:$0xff]
    %v253 = vld [vmem:[%s2 + $0x8] sm:$0xff]
    %v254 = vld [vmem:[%s2 + $0x10] sm:$0xff]
    %v255 = vld [vmem:[%s2 + $0x18] sm:$0xff]
    %v256 = vld [vmem:[%s2 + $0x20] sm:$0xff]
    %v257 = vld [vmem:[%s2 + $0x28] sm:$0xff]
    %v258 = vld [vmem:[%s2 + $0x30] sm:$0xff]
    %v259 = vld [vmem:[%s2 + $0x38] sm:$0xff]
    %v260 = vld [vmem:[%s3] sm:$0x1]
    %261 = vset.pattern.permute.xlu0 0
    %262 = vperm.xlu0 %261, %v252
    %v263 = vpop.permute.xlu0 %262
    %264 = vset.pattern.permute.xlu0 0
    %265 = vperm.xlu0 %264, %v253
    %v266 = vpop.permute.xlu0 %265
    %267 = vset.pattern.permute.xlu0 0
    %268 = vperm.xlu0 %267, %v254
    %v269 = vpop.permute.xlu0 %268
    %270 = vset.pattern.permute.xlu0 0
    %271 = vperm.xlu0 %270, %v255
    %v272 = vpop.permute.xlu0 %271
    %273 = vset.pattern.permute.xlu0 0
    %274 = vperm.xlu0 %273, %v256
    %v275 = vpop.permute.xlu0 %274
    %276 = vset.pattern.permute.xlu0 0
    %277 = vperm.xlu0 %276, %v257
    %v278 = vpop.permute.xlu0 %277
    %279 = vset.pattern.permute.xlu0 0
    %280 = vperm.xlu0 %279, %v258
    %v281 = vpop.permute.xlu0 %280
    %282 = vset.pattern.permute.xlu0 0
    %283 = vperm.xlu0 %282, %v259
    %v284 = vpop.permute.xlu0 %283
    %v285 = vlaneseq
    %v286 = vshrl.u32 %v285, 7
    %v287 = vsub.s32 0, %v286
    %v288 = vrot.slane %v260, %v287
    %vm289 = vcmp.eq.s32.totalorder %v263, %v288
    %vm290 = vcmp.eq.s32.totalorder %v266, %v288
    %vm291 = vcmp.eq.s32.totalorder %v269, %v288
    %vm292 = vcmp.eq.s32.totalorder %v272, %v288
    %vm293 = vcmp.eq.s32.totalorder %v275, %v288
    %vm294 = vcmp.eq.s32.totalorder %v278, %v288
    %vm295 = vcmp.eq.s32.totalorder %v281, %v288
    %vm296 = vcmp.eq.s32.totalorder %v284, %v288
    %v297 = vsel %vm289, %v147, 0.0
    %v298 = vsel %vm290, %v148, 0.0
    %v299 = vsel %vm291, %v149, 0.0
    %v300 = vsel %vm292, %v150, 0.0
    %v301 = vsel %vm293, %v151, 0.0
    %v302 = vsel %vm294, %v152, 0.0
    %v303 = vsel %vm295, %v153, 0.0
    %v304 = vsel %vm296, %v154, 0.0
    %v305 = vsel %vm155, %v297, 0.0
    %306 = vadd.xlane.f32.xlu0 %v305
    %v307 = vpop.xlane.xlu0 %306
    %v308 = vsel %vm155, %v298, 0.0
    %309 = vadd.xlane.f32.xlu0 %v308
    %v310 = vpop.xlane.xlu0 %309
    %v311 = vsel %vm155, %v299, 0.0
    %312 = vadd.xlane.f32.xlu0 %v311
    %v313 = vpop.xlane.xlu0 %312
    %v314 = vsel %vm155, %v300, 0.0
    %315 = vadd.xlane.f32.xlu0 %v314
    %v316 = vpop.xlane.xlu0 %315
    %v317 = vsel %vm155, %v301, 0.0
    %318 = vadd.xlane.f32.xlu0 %v317
    %v319 = vpop.xlane.xlu0 %318
    %v320 = vsel %vm155, %v302, 0.0
    %321 = vadd.xlane.f32.xlu0 %v320
    %v322 = vpop.xlane.xlu0 %321
    %v323 = vsel %vm155, %v303, 0.0
    %324 = vadd.xlane.f32.xlu0 %v323
    %v325 = vpop.xlane.xlu0 %324
    %v326 = vsel %vm155, %v304, 0.0
    %327 = vadd.xlane.f32.xlu0 %v326
    %v328 = vpop.xlane.xlu0 %327
    %v329 = vsel %vm289, 1, 0
    %v330 = vsel %vm290, 1, 0
    %v331 = vsel %vm291, 1, 0
    %v332 = vsel %vm292, 1, 0
    %v333 = vsel %vm293, 1, 0
    %v334 = vsel %vm294, 1, 0
    %v335 = vsel %vm295, 1, 0
    %v336 = vsel %vm296, 1, 0
    %v337 = vcvt.s32.f32 %v329
    %v338 = vcvt.s32.f32 %v330
    %v339 = vcvt.s32.f32 %v331
    %v340 = vcvt.s32.f32 %v332
    %v341 = vcvt.s32.f32 %v333
    %v342 = vcvt.s32.f32 %v334
    %v343 = vcvt.s32.f32 %v335
    %v344 = vcvt.s32.f32 %v336
    %v345 = vsel %vm155, %v337, 0.0
    %346 = vadd.xlane.f32.xlu0 %v345
    %v347 = vpop.xlane.xlu0 %346
    %v348 = vsel %vm155, %v338, 0.0
    %349 = vadd.xlane.f32.xlu0 %v348
    %v350 = vpop.xlane.xlu0 %349
    %v351 = vsel %vm155, %v339, 0.0
    %352 = vadd.xlane.f32.xlu0 %v351
    %v353 = vpop.xlane.xlu0 %352
    %v354 = vsel %vm155, %v340, 0.0
    %355 = vadd.xlane.f32.xlu0 %v354
    %v356 = vpop.xlane.xlu0 %355
    %v357 = vsel %vm155, %v341, 0.0
    %358 = vadd.xlane.f32.xlu0 %v357
    %v359 = vpop.xlane.xlu0 %358
    %v360 = vsel %vm155, %v342, 0.0
    %361 = vadd.xlane.f32.xlu0 %v360
    %v362 = vpop.xlane.xlu0 %361
    %v363 = vsel %vm155, %v343, 0.0
    %364 = vadd.xlane.f32.xlu0 %v363
    %v365 = vpop.xlane.xlu0 %364
    %v366 = vsel %vm155, %v344, 0.0
    %367 = vadd.xlane.f32.xlu0 %v366
    %v368 = vpop.xlane.xlu0 %367
    %v369 = vsel %vm155, %v147, 0.0
    %370 = vadd.xlane.f32.xlu0 %v369
    %v371 = vpop.xlane.xlu0 %370
    %v372 = vsel %vm155, %v148, 0.0
    %373 = vadd.xlane.f32.xlu0 %v372
    %v374 = vpop.xlane.xlu0 %373
    %v375 = vsel %vm155, %v149, 0.0
    %376 = vadd.xlane.f32.xlu0 %v375
    %v377 = vpop.xlane.xlu0 %376
    %v378 = vsel %vm155, %v150, 0.0
    %379 = vadd.xlane.f32.xlu0 %v378
    %v380 = vpop.xlane.xlu0 %379
    %v381 = vsel %vm155, %v151, 0.0
    %382 = vadd.xlane.f32.xlu0 %v381
    %v383 = vpop.xlane.xlu0 %382
    %v384 = vsel %vm155, %v152, 0.0
    %385 = vadd.xlane.f32.xlu0 %v384
    %v386 = vpop.xlane.xlu0 %385
    %v387 = vsel %vm155, %v153, 0.0
    %388 = vadd.xlane.f32.xlu0 %v387
    %v389 = vpop.xlane.xlu0 %388
    %v390 = vsel %vm155, %v154, 0.0
    %391 = vadd.xlane.f32.xlu0 %v390
    %v392 = vpop.xlane.xlu0 %391
    %v393 = vmul.f32 %v307, 2.0
    %v394 = vmul.f32 %v310, 2.0
    %v395 = vmul.f32 %v313, 2.0
    %v396 = vmul.f32 %v316, 2.0
    %v397 = vmul.f32 %v319, 2.0
    %v398 = vmul.f32 %v322, 2.0
    %v399 = vmul.f32 %v325, 2.0
    %v400 = vmul.f32 %v328, 2.0
    %v401 = vsub.f32 %v393, %v371
    %v402 = vsub.f32 %v394, %v374
    %v403 = vsub.f32 %v395, %v377
    %v404 = vsub.f32 %v396, %v380
    %v405 = vsub.f32 %v397, %v383
    %v406 = vsub.f32 %v398, %v386
    %v407 = vsub.f32 %v399, %v389
    %v408 = vsub.f32 %v400, %v392
    %v409 = vmul.f32 %v347, 2.0
    %v410 = vmul.f32 %v350, 2.0
    %v411 = vmul.f32 %v353, 2.0
    %v412 = vmul.f32 %v356, 2.0
    %v413 = vmul.f32 %v359, 2.0
    %v414 = vmul.f32 %v362, 2.0
    %v415 = vmul.f32 %v365, 2.0
    %v416 = vmul.f32 %v368, 2.0
    %v417 = vsub.f32 64.0, %v409
    %v418 = vsub.f32 64.0, %v410
    %v419 = vsub.f32 64.0, %v411
    %v420 = vsub.f32 64.0, %v412
    %v421 = vsub.f32 64.0, %v413
    %v422 = vsub.f32 64.0, %v414
    %v423 = vsub.f32 64.0, %v415
    %v424 = vsub.f32 64.0, %v416
    %v425 = vmul.f32 %v417, %v244
    %v426 = vmul.f32 %v418, %v245
    %v427 = vmul.f32 %v419, %v246
    %v428 = vmul.f32 %v420, %v247
    %v429 = vmul.f32 %v421, %v248
    %v430 = vmul.f32 %v422, %v249
    %v431 = vmul.f32 %v423, %v250
    %v432 = vmul.f32 %v424, %v251
    %v433 = vadd.f32 %v401, %v425
    %v434 = vadd.f32 %v402, %v426
    %v435 = vadd.f32 %v403, %v427
    %v436 = vadd.f32 %v404, %v428
    %v437 = vadd.f32 %v405, %v429
    %v438 = vadd.f32 %v406, %v430
    %v439 = vadd.f32 %v407, %v431
    %v440 = vadd.f32 %v408, %v432
    %s441 = smul.u32 0, 64
    %v442 = vlaneseq
    %v443 = vshrl.u32 %v442, 7
    %v444 = vadd.s32 %v443, 8
    %v445 = vadd.s32 %v443, 16
    %v446 = vadd.s32 %v443, 24
    %v447 = vadd.s32 %v443, 32
    %v448 = vadd.s32 %v443, 40
    %v449 = vadd.s32 %v443, 48
    %v450 = vadd.s32 %v443, 56
    %v451 = vstv %s441
    %v452 = vadd.s32 %v451, %v443
    %v453 = vadd.s32 %v451, %v444
    %v454 = vadd.s32 %v451, %v445
    %v455 = vadd.s32 %v451, %v446
    %v456 = vadd.s32 %v451, %v447
    %v457 = vadd.s32 %v451, %v448
    %v458 = vadd.s32 %v451, %v449
    %v459 = vadd.s32 %v451, %v450
    %vm460 = vcmp.lt.s32.totalorder %v452, 64
    %vm461 = vcmp.lt.s32.totalorder %v453, 64
    %vm462 = vcmp.lt.s32.totalorder %v454, 64
    %vm463 = vcmp.lt.s32.totalorder %v455, 64
    %vm464 = vcmp.lt.s32.totalorder %v456, 64
    %vm465 = vcmp.lt.s32.totalorder %v457, 64
    %vm466 = vcmp.lt.s32.totalorder %v458, 64
    %vm467 = vcmp.lt.s32.totalorder %v459, 64
    %v468 = vsel %vm460, %v433, 0.0
    %v469 = vsel %vm461, %v434, 0.0
    %v470 = vsel %vm462, %v435, 0.0
    %v471 = vsel %vm463, %v436, 0.0
    %v472 = vsel %vm464, %v437, 0.0
    %v473 = vsel %vm465, %v438, 0.0
    %v474 = vsel %vm466, %v439, 0.0
    %v475 = vsel %vm467, %v440, 0.0
    %v476 = vadd.f32 %v468, %v469
    %v477 = vadd.f32 %v476, %v470
    %v478 = vadd.f32 %v477, %v471
    %v479 = vadd.f32 %v478, %v472
    %v480 = vadd.f32 %v479, %v473
    %v481 = vadd.f32 %v480, %v474
    %v482 = vadd.f32 %v481, %v475
    %v483 = vrot.slane %v482, 4
    %v484 = vadd.f32 %v482, %v483
    %v485 = vrot.slane %v484, 2
    %v486 = vadd.f32 %v484, %v485
    %v487 = vrot.slane %v486, 1
    %v488 = vadd.f32 %v486, %v487
    %v489 = vld [vmem:[#allocation2] sm:$0x1]
    %v490 = vadd.f32 %v489, %v488
    %vm491 = vcmask 0
    %492 = vst.msk [vmem:[#allocation2] sm:$0x1] %vm491, %v490
    // Predicated region
    $region22: #{tpu_custom_call.1} parent=1 // pred_check
      _
    $region23: #{tpu_custom_call.1} parent=1 // pred_check_branch
      %494 = sbr.rel (0) target = $region25
    $region24: #{tpu_custom_call.1} parent=1 // pred_region
      %s496 = ssub.s32 16, 16
      %497 = vsyncadd [#allocation3], %s496
      %s499 = sshll.u32 [#allocation2], 4
      %s500 = int_to_ptr.vmem [resolvable:$true] %s499
      %502 = dma.vmem_to_hbm [thread:$0]  %s500, 16, %s4, [#allocation3]
    $region25: #{tpu_custom_call.1} parent=1 // pred_fallthru
      _
    // Predicated region
    $region26: #{tpu_custom_call.1} parent=1 // pred_check
      _
    $region27: #{tpu_custom_call.1} parent=1 // pred_check_branch
      %504 = sbr.rel (0) target = $region29
    $region28: #{tpu_custom_call.1} parent=1 // pred_region
      %505 = dma.done [#allocation3], 16
    $region29: #{tpu_custom_call.1} parent=1 // pred_fallthru
      _
    %506 = vsyncpa [#allocation3], 1

</llo_original>
